<compile_context>
chip_gen: v6e
topology: v6e:2x2x1
jax: 0.10.0
libtpu: 0.0.40
codegen_flags: <defaults>
</compile_context>

<pallas_src>
import functools

import jax
import jax.numpy as jnp
import numpy as np
from jax.experimental import pallas as pl
from jax.experimental.pallas import tpu as pltpu

N_NODES = 22
N_FEAT_IN = 3

# SHREC-2017 hand-skeleton adjacency (22 joints), edge list of
# AdjacencyMatrix.hand.
_HAND_EDGES = [
    (0, 1), (1, 2), (2, 3), (3, 4), (4, 5),
    (1, 6), (6, 7), (7, 8), (8, 9),
    (1, 10), (10, 11), (11, 12), (12, 13),
    (1, 14), (14, 15), (15, 16), (16, 17),
    (1, 18), (18, 19), (19, 20), (20, 21),
]


def hand_adjacency():
    a = np.zeros((N_NODES, N_NODES), dtype=np.float32)
    for i, j in _HAND_EDGES:
        a[i, j] = 1.0
        a[j, i] = 1.0
    return jnp.asarray(a)


def _round_up(x, m):
    return ((x + m - 1) // m) * m


def gcn_kernel(x_ref, w_ref, b_ref, o_ref):
    # x_ref: (tm, 66)    one tile of flattened input rows
    # w_ref: (66, 22*f)  fused kron(adj^T, W) (graph mixing + feature transform)
    # b_ref: (1, 22*f)   bias tiled per node
    # o_ref: (tm, 22*f)
    out = jnp.dot(x_ref[...], w_ref[...], preferred_element_type=jnp.float32)
    o_ref[...] = (out + b_ref[...]).astype(o_ref.dtype)


@functools.partial(jax.jit, static_argnames=("tm",))
def gcn_forward(x, weight, bias, adj, *, tm=2048):
    """x: (N, L, 22*3) float32 -> (N, L, 22*f) float32."""
    n, l, c_in = x.shape
    assert c_in == N_NODES * N_FEAT_IN
    f = weight.shape[1]
    c_out = N_NODES * f
    m = n * l

    x_flat = x.reshape(m, c_in)

    # ---- constant parameter plumbing (tiny, shape-independent) -------------
    # W_fused[3j+c, i*f+g] = adj[i, j] * W[c, g]  ==  kron(adj^T, W)
    w_fused = jnp.kron(adj.T.astype(x.dtype), weight.astype(x.dtype))  # (66, 22f)
    b_rep = jnp.tile(bias, N_NODES).reshape(1, c_out).astype(jnp.float32)

    # ---- row tiling: big tiles, pad M up to a multiple of the tile ----------
    tm_eff = min(tm, max(8, _round_up(m, 8)))   # shrink tile for tiny inputs
    tm_eff = _round_up(tm_eff, 8)               # sublane-aligned
    m_pad = _round_up(m, tm_eff)
    if m_pad != m:
        x_flat = jnp.pad(x_flat, ((0, m_pad - m), (0, 0)))

    grid = (m_pad // tm_eff,)

    out_flat = pl.pallas_call(
        gcn_kernel,
        out_shape=jax.ShapeDtypeStruct((m_pad, c_out), x.dtype),
        grid_spec=pl.GridSpec(
            grid=grid,
            in_specs=[
                pl.BlockSpec((tm_eff, c_in), lambda i: (i, 0)),
                pl.BlockSpec((c_in, c_out), lambda i: (0, 0)),
                pl.BlockSpec((1, c_out), lambda i: (0, 0)),
            ],
            out_specs=pl.BlockSpec((tm_eff, c_out), lambda i: (i, 0)),
        ),
        compiler_params=pltpu.CompilerParams(
            dimension_semantics=("parallel",)),
    )(x_flat, w_fused, b_rep)

    return out_flat[:m].reshape(n, l, c_out)


def reference_forward(x, weight, bias, adj):
    n, l, _ = x.shape
    f = weight.shape[1]
    xg = x.reshape(n, l, N_NODES, N_FEAT_IN)            # ShapeGraph
    support = jnp.einsum("nljc,cg->nljg", xg, weight)   # x @ W
    out = jnp.einsum("ij,nljg->nlig", adj, support)     # adj @ support
    out = out + bias                                    # + bias
    return out.reshape(n, l, N_NODES * f)               # UnshapeGraph


if __name__ == "__main__":
    # GCN(output_channels=88)  =>  f = 88 / 22 = 4
    output_channels = 88
    f = output_channels // N_NODES

    key = jax.random.PRNGKey(0)
    kx, kw, kb, kx2 = jax.random.split(key, 4)

    # GraphConvolution.reset_parameters(): uniform(-stdv, stdv), stdv = 1/sqrt(f)
    stdv = 1.0 / np.sqrt(f)
    weight = jax.random.uniform(kw, (N_FEAT_IN, f), dtype=jnp.float32,
                                minval=-stdv, maxval=stdv)
    bias = jax.random.uniform(kb, (f,), dtype=jnp.float32,
                              minval=-stdv, maxval=stdv)
    adj = hand_adjacency()

    # Small, aligned case: batch=2, seq=8  -> M = 16 rows.
    x = jax.random.normal(kx, (2, 8, N_NODES * N_FEAT_IN), dtype=jnp.float32)
    out = jax.block_until_ready(gcn_forward(x, weight, bias, adj))
    ref = reference_forward(x, weight, bias, adj)
    assert out.shape == (2, 8, output_channels)
    np.testing.assert_allclose(np.asarray(out), np.asarray(ref),
                               rtol=1e-4, atol=1e-4)

    # Non-multiple-of-8 row count: batch=3, seq=5 -> M = 15 (exercises padding).
    x2 = jax.random.normal(kx2, (3, 5, N_NODES * N_FEAT_IN), dtype=jnp.float32)
    out2 = jax.block_until_ready(gcn_forward(x2, weight, bias, adj))
    ref2 = reference_forward(x2, weight, bias, adj)
    assert out2.shape == (3, 5, output_channels)
    np.testing.assert_allclose(np.asarray(out2), np.asarray(ref2),
                               rtol=1e-4, atol=1e-4)

    print("KERNEL_OK")
</pallas_src>

<mosaic_0001>
module attributes {stable_mosaic.version = 11 : i64} {
  func.func @gcn_kernel(%arg0: i32, %arg1: memref<16x66xf32, #tpu.memory_space<vmem>>, %arg2: memref<66x88xf32, #tpu.memory_space<vmem>>, %arg3: memref<1x88xf32, #tpu.memory_space<vmem>>, %arg4: memref<16x88xf32, #tpu.memory_space<vmem>>) attributes {dimension_semantics = [#tpu.dimension_semantics<parallel>], iteration_bounds = array<i64: 1>, scalar_prefetch = 0 : i64, scratch_operands = 0 : i64, tpu.core_type = #tpu.core_type<tc>, window_params = [{transform_indices = @transform_0, window_bounds = array<i64: 16, 66>}, {pipeline_mode = #tpu.pipeline_mode<synchronous>, transform_indices = @transform_1, window_bounds = array<i64: 66, 88>}, {pipeline_mode = #tpu.pipeline_mode<synchronous>, transform_indices = @transform_2, window_bounds = array<i64: 1, 88>}, {transform_indices = @transform_3, window_bounds = array<i64: 16, 88>}]} {
    %c0 = arith.constant 0 : index
    %c0_0 = arith.constant 0 : index
    %0 = vector.load %arg1[%c0, %c0_0] : memref<16x66xf32, #tpu.memory_space<vmem>>, vector<16x66xf32>
    %c0_1 = arith.constant 0 : index
    %c0_2 = arith.constant 0 : index
    %1 = vector.load %arg2[%c0_1, %c0_2] : memref<66x88xf32, #tpu.memory_space<vmem>>, vector<66x88xf32>
    %cst = arith.constant dense<0.000000e+00> : vector<16x88xf32>
    %2 = tpu.matmul %0, %1, %cst {dimension_numbers = #tpu.dot_dimension_numbers<[1], [0], [0], [1], [0, 0, 1, 1], [], []>} : vector<16x66xf32>, vector<66x88xf32>, vector<16x88xf32> -> vector<16x88xf32>
    %c0_3 = arith.constant 0 : index
    %c0_4 = arith.constant 0 : index
    %3 = vector.load %arg3[%c0_3, %c0_4] : memref<1x88xf32, #tpu.memory_space<vmem>>, vector<1x88xf32>
    %4 = vector.broadcast %3 : vector<1x88xf32> to vector<16x88xf32>
    %5 = arith.addf %2, %4 : vector<16x88xf32>
    %c0_5 = arith.constant 0 : index
    %c0_6 = arith.constant 0 : index
    %6 = vector.load %arg4[%c0_5, %c0_6] : memref<16x88xf32, #tpu.memory_space<vmem>>, vector<16x88xf32>
    tpu.vector_store %arg4[%c0_5, %c0_6], %5 {strides = array<i32>} : memref<16x88xf32, #tpu.memory_space<vmem>>, vector<16x88xf32>,
    return
  }
  func.func @transform_0(%arg0: i32) -> (i32, i32) {
    %c0_i32 = arith.constant 0 : i32
    %c0_i32_0 = arith.constant 0 : i32
    return %arg0, %c0_i32 : i32, i32
  }
  func.func @transform_1(%arg0: i32) -> (i32, i32) {
    %c0_i32 = arith.constant 0 : i32
    %c0_i32_0 = arith.constant 0 : i32
    %c0_i32_1 = arith.constant 0 : i32
    return %c0_i32, %c0_i32_0 : i32, i32
  }
  func.func @transform_2(%arg0: i32) -> (i32, i32) {
    %c0_i32 = arith.constant 0 : i32
    %c0_i32_0 = arith.constant 0 : i32
    %c0_i32_1 = arith.constant 0 : i32
    return %c0_i32, %c0_i32_0 : i32, i32
  }
  func.func @transform_3(%arg0: i32) -> (i32, i32) {
    %c0_i32 = arith.constant 0 : i32
    %c0_i32_0 = arith.constant 0 : i32
    return %arg0, %c0_i32 : i32, i32
  }
}

</mosaic_0001>

<llo_original>
// kernel: tile.8
$region0: #{tile.8}
  #allocation0 [shape = 's32[1]{0}', space=sflag, size = 0x4, scoped, tag = 'scoped memory for tile.8']
  %s0 = inlined_call_operand.vmem [shape: f32[4], index: 0, kind: input, shape index: {}]
  %s1 = inlined_call_operand.vmem [shape: f32[22,4], index: 1, kind: output, shape index: {}]
  // Predicated region
  $region2: #{tile.8} parent=0 // pred_check
    _
  $region3: #{tile.8} parent=0 // pred_check_branch
    %3 = sbr.rel (0) target = $region5
  $region4: #{tile.8} parent=0 // pred_region
    _
  $region5: #{tile.8} parent=0 // pred_fallthru
    _
  %v4 = vld [vmem:[%s0] ss:$0 sm:$0xff]
  %5 = vst [vmem:[%s1] sm:$0xff] %v4
  %s6 = scalar_lea.vmem %s1, 8
  %7 = vst [vmem:[%s6] sm:$0xff] %v4
  %s8 = scalar_lea.vmem %s1, 16
  %9 = vst [vmem:[%s8] sm:$0xff] %v4

// kernel: tile.9
$region0: #{tile.9}
  %s0 = inlined_call_operand.vmem [shape: f32[22,4], index: 0, kind: input, shape index: {}]
  %s1 = inlined_call_operand.vmem [shape: f32[1,88], index: 1, kind: output, shape index: {}]
  $region1: #{tile.9} parent=0
    #allocation0 [shape = 'u8[4096]{0}', space=vmem, size = 0x1000, scoped, tag = 'scoped mem for output reshape']
    %v2 = vld [vmem:[%s0] sm:$0x1]
    %vm3 = vcmask 31744
    %4 = vst.msk [vmem:[#allocation0] sm:$0x1] %vm3, %v2
    %s5 = scalar_lea.vmem %s0, 21
    %v6 = vld [vmem:[%s5] sm:$0x1]
    %7 = vrot.lane.b32.xlu0 %v6, 84
    %v8 = vpop.permute.xlu0 %7
    %vm9 = vcmask 720544
    %10 = vst.msk [vmem:[#allocation0] sm:$0x1] %vm9, %v8
    %s11 = scalar_lea.vmem %s0, 20
    %v12 = vld [vmem:[%s11] sm:$0x1]
    %13 = vrot.lane.b32.xlu0 %v12, 80
    %v14 = vpop.permute.xlu0 %13
    %vm15 = vcmask 687744
    %16 = vst.msk [vmem:[#allocation0] sm:$0x1] %vm15, %v14
    %s17 = scalar_lea.vmem %s0, 19
    %v18 = vld [vmem:[%s17] sm:$0x1]
    %19 = vrot.lane.b32.xlu0 %v18, 76
    %v20 = vpop.permute.xlu0 %19
    %vm21 = vcmask 654944
    %22 = vst.msk [vmem:[#allocation0] sm:$0x1] %vm21, %v20
    %s23 = scalar_lea.vmem %s0, 18
    %v24 = vld [vmem:[%s23] sm:$0x1]
    %25 = vrot.lane.b32.xlu0 %v24, 72
    %v26 = vpop.permute.xlu0 %25
    %vm27 = vcmask 622144
    %28 = vst.msk [vmem:[#allocation0] sm:$0x1] %vm27, %v26
    %s29 = scalar_lea.vmem %s0, 17
    %v30 = vld [vmem:[%s29] sm:$0x1]
    %31 = vrot.lane.b32.xlu0 %v30, 68
    %v32 = vpop.permute.xlu0 %31
    %vm33 = vcmask 589344
    %34 = vst.msk [vmem:[#allocation0] sm:$0x1] %vm33, %v32
    %s35 = scalar_lea.vmem %s0, 16
    %v36 = vld [vmem:[%s35] sm:$0x1]
    %37 = vrot.lane.b32.xlu0 %v36, 64
    %v38 = vpop.permute.xlu0 %37
    %vm39 = vcmask 556544
    %40 = vst.msk [vmem:[#allocation0] sm:$0x1] %vm39, %v38
    %s41 = scalar_lea.vmem %s0, 15
    %v42 = vld [vmem:[%s41] sm:$0x1]
    %43 = vrot.lane.b32.xlu0 %v42, 60
    %v44 = vpop.permute.xlu0 %43
    %vm45 = vcmask 523744
    %46 = vst.msk [vmem:[#allocation0] sm:$0x1] %vm45, %v44
    %s47 = scalar_lea.vmem %s0, 14
    %v48 = vld [vmem:[%s47] sm:$0x1]
    %49 = vrot.lane.b32.xlu0 %v48, 56
    %v50 = vpop.permute.xlu0 %49
    %vm51 = vcmask 490944
    %52 = vst.msk [vmem:[#allocation0] sm:$0x1] %vm51, %v50
    %s53 = scalar_lea.vmem %s0, 13
    %v54 = vld [vmem:[%s53] sm:$0x1]
    %55 = vrot.lane.b32.xlu0 %v54, 52
    %v56 = vpop.permute.xlu0 %55
    %vm57 = vcmask 458144
    %58 = vst.msk [vmem:[#allocation0] sm:$0x1] %vm57, %v56
    %s59 = scalar_lea.vmem %s0, 12
    %v60 = vld [vmem:[%s59] sm:$0x1]
    %61 = vrot.lane.b32.xlu0 %v60, 48
    %v62 = vpop.permute.xlu0 %61
    %vm63 = vcmask 425344
    %64 = vst.msk [vmem:[#allocation0] sm:$0x1] %vm63, %v62
    %s65 = scalar_lea.vmem %s0, 11
    %v66 = vld [vmem:[%s65] sm:$0x1]
    %67 = vrot.lane.b32.xlu0 %v66, 44
    %v68 = vpop.permute.xlu0 %67
    %vm69 = vcmask 392544
    %70 = vst.msk [vmem:[#allocation0] sm:$0x1] %vm69, %v68
    %s71 = scalar_lea.vmem %s0, 10
    %v72 = vld [vmem:[%s71] sm:$0x1]
    %73 = vrot.lane.b32.xlu0 %v72, 40
    %v74 = vpop.permute.xlu0 %73
    %vm75 = vcmask 359744
    %76 = vst.msk [vmem:[#allocation0] sm:$0x1] %vm75, %v74
    %s77 = scalar_lea.vmem %s0, 9
    %v78 = vld [vmem:[%s77] sm:$0x1]
    %79 = vrot.lane.b32.xlu0 %v78, 36
    %v80 = vpop.permute.xlu0 %79
    %vm81 = vcmask 326944
    %82 = vst.msk [vmem:[#allocation0] sm:$0x1] %vm81, %v80
    %s83 = scalar_lea.vmem %s0, 8
    %v84 = vld [vmem:[%s83] sm:$0x1]
    %85 = vrot.lane.b32.xlu0 %v84, 32
    %v86 = vpop.permute.xlu0 %85
    %vm87 = vcmask 294144
    %88 = vst.msk [vmem:[#allocation0] sm:$0x1] %vm87, %v86
    %s89 = scalar_lea.vmem %s0, 7
    %v90 = vld [vmem:[%s89] sm:$0x1]
    %91 = vrot.lane.b32.xlu0 %v90, 28
    %v92 = vpop.permute.xlu0 %91
    %vm93 = vcmask 261344
    %94 = vst.msk [vmem:[#allocation0] sm:$0x1] %vm93, %v92
    %s95 = scalar_lea.vmem %s0, 6
    %v96 = vld [vmem:[%s95] sm:$0x1]
    %97 = vrot.lane.b32.xlu0 %v96, 24
    %v98 = vpop.permute.xlu0 %97
    %vm99 = vcmask 228544
    %100 = vst.msk [vmem:[#allocation0] sm:$0x1] %vm99, %v98
    %s101 = scalar_lea.vmem %s0, 5
    %v102 = vld [vmem:[%s101] sm:$0x1]
    %103 = vrot.lane.b32.xlu0 %v102, 20
    %v104 = vpop.permute.xlu0 %103
    %vm105 = vcmask 195744
    %106 = vst.msk [vmem:[#allocation0] sm:$0x1] %vm105, %v104
    %s107 = scalar_lea.vmem %s0, 4
    %v108 = vld [vmem:[%s107] sm:$0x1]
    %109 = vrot.lane.b32.xlu0 %v108, 16
    %v110 = vpop.permute.xlu0 %109
    %vm111 = vcmask 162944
    %112 = vst.msk [vmem:[#allocation0] sm:$0x1] %vm111, %v110
    %s113 = scalar_lea.vmem %s0, 3
    %v114 = vld [vmem:[%s113] sm:$0x1]
    %115 = vrot.lane.b32.xlu0 %v114, 12
    %v116 = vpop.permute.xlu0 %115
    %vm117 = vcmask 130144
    %118 = vst.msk [vmem:[#allocation0] sm:$0x1] %vm117, %v116
    %s119 = scalar_lea.vmem %s0, 2
    %v120 = vld [vmem:[%s119] sm:$0x1]
    %121 = vrot.lane.b32.xlu0 %v120, 8
    %v122 = vpop.permute.xlu0 %121
    %vm123 = vcmask 97344
    %124 = vst.msk [vmem:[#allocation0] sm:$0x1] %vm123, %v122
    %s125 = scalar_lea.vmem %s0, 1
    %v126 = vld [vmem:[%s125] sm:$0x1]
    %127 = vrot.lane.b32.xlu0 %v126, 4
    %v128 = vpop.permute.xlu0 %127
    %vm129 = vcmask 64544
    %130 = vst.msk [vmem:[#allocation0] sm:$0x1] %vm129, %v128
    %s132 = sshll.u32 1, 1
    %s133 = ssub.s32 %s132, 1
    %v135 = vld [vmem:[#allocation0] sm:%s133]
    %s136 = sshll.u32 1, 1
    %s137 = ssub.s32 %s136, 1
    %138 = vst [vmem:[%s1] sm:%s137] %v135

// kernel: gcn_forward.1
$region0: #{gcn_forward.1}
  #allocation0 [shape = 'u32[]', space=smem, size = 0x4, offset = 0x4, fixed_abs, tag = 'smem constant byte address 0x4 - core index']
  #allocation1 [shape = 'u32[144,128]{1,0:T(1,128)}', space=vmem, size = 0x12000, scoped, tag = 'internal scratch']
  %s0 = inlined_call_operand.vmem [shape: f32[16,66], index: 0, kind: input, shape index: {}]
  %s1 = inlined_call_operand.vmem [shape: f32[66,88], index: 1, kind: input, shape index: {}]
  %s2 = inlined_call_operand.vmem [shape: f32[1,88], index: 2, kind: input, shape index: {}]
  %s3 = inlined_call_operand.hbm [shape: f32[16,88], index: 3, kind: output, shape index: {}]
  %s4 = sld [smem:[#allocation0]]
  $region22: #{gcn_forward.1} parent=0
    _
  %s6 = ssub.s32 1, %s4
  %s7 = scalar_select 0, %s6, %s4
  $region1: #{gcn_forward.1} parent=0
    #allocation2 [shape = 'u8[8192]{0}', space=vmem, size = 0x2000, scoped, tag = 'output window, operand 0, single buffered']
    #allocation3 [shape = 's32[1]{0}', space=sflag, size = 0x4, scoped, tag = 'scoped memory for gcn_forward.1']
    %8 = vsyncpa [#allocation3], 0
    // Predicated region
    $region2: #{gcn_forward.1} parent=1 // pred_check
      _
    $region3: #{gcn_forward.1} parent=1 // pred_check_branch
      %10 = sbr.rel (0) target = $region5
    $region4: #{gcn_forward.1} parent=1 // pred_region
      _
    $region5: #{gcn_forward.1} parent=1 // pred_fallthru
      _
    // Predicated region
    $region6: #{gcn_forward.1} parent=1 // pred_check
      _
    $region7: #{gcn_forward.1} parent=1 // pred_check_branch
      %12 = sbr.rel (0) target = $region9
    $region8: #{gcn_forward.1} parent=1 // pred_region
      _
    $region9: #{gcn_forward.1} parent=1 // pred_fallthru
      _
    // Predicated region
    $region10: #{gcn_forward.1} parent=1 // pred_check
      _
    $region11: #{gcn_forward.1} parent=1 // pred_check_branch
      %14 = sbr.rel (0) target = $region13
    $region12: #{gcn_forward.1} parent=1 // pred_region
      _
    $region13: #{gcn_forward.1} parent=1 // pred_fallthru
      _
    %v15 = vld [vmem:[%s0] sm:$0xff]
    %v16 = vld [vmem:[%s0 + $0x8] sm:$0xff]
    %v17 = vld [vmem:[%s1] sm:$0xff]
    %v18 = vld [vmem:[%s1 + $0x8] sm:$0xff]
    %v19 = vld [vmem:[%s1 + $0x10] sm:$0xff]
    %v20 = vld [vmem:[%s1 + $0x18] sm:$0xff]
    %v21 = vld [vmem:[%s1 + $0x20] sm:$0xff]
    %v22 = vld [vmem:[%s1 + $0x28] sm:$0xff]
    %v23 = vld [vmem:[%s1 + $0x30] sm:$0xff]
    %v24 = vld [vmem:[%s1 + $0x38] sm:$0xff]
    %v25 = vld [vmem:[%s1 + $0x40] sm:$0x3]
    %v26 = vld [vmem:[%s2] sm:$0x1]
    %v28 = vlaneseq
    %v29 = vshrl.u32 %v28, 7
    %v30 = vsub.s32 0, %v29
    %v31 = vrot.slane %v26, %v30
    %vm33 = vcmask 539648
    %v35 = vsel %vm33, %v15, 0
    %v38 = vsel %vm33, %v16, 0
    %vm40 = vcmask 1041408
    %v42 = vsel %vm40, %v25, 0
    %44 = vmatprep.subr.mxu0 0.0
    %45 = vmatpush1.msra.mxu0 0.0
    %46 = vmatprep.subr.mxu0 0.0
    %47 = vmatpush1.msra.mxu0 0.0
    %48 = vmatprep.subr.mxu0 0.0
    %49 = vmatpush1.msra.mxu0 0.0
    %50 = vmatprep.subr.mxu0 0.0
    %51 = vmatpush1.msra.mxu0 0.0
    %52 = vmatprep.subr.mxu0 0.0
    %53 = vmatpush1.msra.mxu0 0.0
    %54 = vmatprep.subr.mxu0 0.0
    %55 = vmatpush1.msra.mxu0 0.0
    %56 = vmatprep.subr.mxu0 0.0
    %57 = vmatpush1.msra.mxu0 0.0
    %58 = vmatprep.subr.mxu0 0.0
    %59 = vmatpush1.msra.mxu0 %v42
    %60 = vmatprep.subr.mxu0 0.0
    %61 = vmatpush1.msra.mxu0 %v24
    %62 = vmatprep.subr.mxu0 0.0
    %63 = vmatpush1.msra.mxu0 %v23
    %64 = vmatprep.subr.mxu0 0.0
    %65 = vmatpush1.msra.mxu0 %v22
    %66 = vmatprep.subr.mxu0 0.0
    %67 = vmatpush1.msra.mxu0 %v21
    %68 = vmatprep.subr.mxu0 0.0
    %69 = vmatpush1.msra.mxu0 %v20
    %70 = vmatprep.subr.mxu0 0.0
    %71 = vmatpush1.msra.mxu0 %v19
    %72 = vmatprep.subr.mxu0 0.0
    %73 = vmatpush1.msra.mxu0 %v18
    %74 = vmatprep.subr.mxu0 0.0
    %75 = vmatpush1.msra.mxu0 %v17
    %76 = vmatprep.subr.mxu0 0.0
    %77 = vmatpush2.msra.mxu0 0.0
    %78 = vmatprep.subr.mxu0 0.0
    %79 = vmatpush2.msra.mxu0 0.0
    %80 = vmatprep.subr.mxu0 0.0
    %81 = vmatpush2.msra.mxu0 0.0
    %82 = vmatprep.subr.mxu0 0.0
    %83 = vmatpush2.msra.mxu0 0.0
    %84 = vmatprep.subr.mxu0 0.0
    %85 = vmatpush2.msra.mxu0 0.0
    %86 = vmatprep.subr.mxu0 0.0
    %87 = vmatpush2.msra.mxu0 0.0
    %88 = vmatprep.subr.mxu0 0.0
    %89 = vmatpush2.msra.mxu0 0.0
    %90 = vmatprep.subr.mxu0 0.0
    %91 = vmatpush2.msra.mxu0 0.0
    %92 = vmatprep.subr.mxu0 0.0
    %93 = vmatpush2.msra.mxu0 0.0
    %94 = vmatprep.subr.mxu0 0.0
    %95 = vmatpush2.msra.mxu0 0.0
    %96 = vmatprep.subr.mxu0 0.0
    %97 = vmatpush2.msra.mxu0 0.0
    %98 = vmatprep.subr.mxu0 0.0
    %99 = vmatpush2.msra.mxu0 0.0
    %100 = vmatprep.subr.mxu0 0.0
    %101 = vmatpush2.msra.mxu0 0.0
    %102 = vmatprep.subr.mxu0 0.0
    %103 = vmatpush2.msra.mxu0 0.0
    %104 = vmatprep.subr.mxu0 0.0
    %105 = vmatpush2.msra.mxu0 0.0
    %106 = vmatprep.subr.mxu0 0.0
    %107 = vmatpush2.msra.mxu0 0.0
    %108 = vmatprep.mubr.f32.mxu0 0.0
    %109 = vmatmul.mubr.f32.gmra.mxu0 %v35
    %v110 = vpop.f32.mrf.mxu0
    %v111 = vadd.f32 %v31, %v110
    %v112 = vpop.f32.mrf.mxu0
    %113 = vmatprep.mubr.f32.mxu0 0.0
    %114 = vmatmul.mubr.f32.gmra.mxu0 %v38
    %v115 = vpop.f32.mrf.mxu0
    %v116 = vadd.f32 %v31, %v115
    %v117 = vpop.f32.mrf.mxu0
    %118 = vdwg.mxu0
    %vm119 = vcmask 719872
    %120 = vst.msk [vmem:[#allocation2] sm:$0xff] %vm119, %v111
    %121 = vst.msk [vmem:[#allocation2 + $0x8] sm:$0xff] %vm119, %v116
    // Predicated region
    $region14: #{gcn_forward.1} parent=1 // pred_check
      _
    $region15: #{gcn_forward.1} parent=1 // pred_check_branch
      %123 = sbr.rel (0) target = $region17
    $region16: #{gcn_forward.1} parent=1 // pred_region
      %s125 = ssub.s32 256, 256
      %126 = vsyncadd [#allocation3], %s125
      %s127 = sshll.u32 [#allocation2], 4
      %s128 = int_to_ptr.vmem [resolvable:$true] %s127
      %133 = dma.vmem_to_hbm [thread:$0]  %s128, 256, %s3, [#allocation3], 128, 128, 8
    $region17: #{gcn_forward.1} parent=1 // pred_fallthru
      _
    // Predicated region
    $region18: #{gcn_forward.1} parent=1 // pred_check
      _
    $region19: #{gcn_forward.1} parent=1 // pred_check_branch
      %135 = sbr.rel (0) target = $region21
    $region20: #{gcn_forward.1} parent=1 // pred_region
      %136 = dma.done [#allocation3], 256
    $region21: #{gcn_forward.1} parent=1 // pred_fallthru
      _
    %137 = vsyncpa [#allocation3], 1

</llo_original>
